<compile_context>
chip_gen: v7x
topology: tpu7x:2x2x1
jax: 0.10.0
libtpu: 0.0.40
codegen_flags: <defaults>
</compile_context>

<pallas_src>
import jax
import jax.numpy as jnp
from jax.experimental import pallas as pl
from jax.experimental.pallas import tpu as pltpu


def _round_up(x, m):
    return ((x + m - 1) // m) * m


def _vmem_capacity_bytes():
    """Best-effort per-core VMEM capacity (falls back to 128 MiB)."""
    try:
        info = pltpu.get_tpu_info()
        v = getattr(info, "vmem_capacity_bytes", None)
        if v:
            return int(v)
    except Exception:
        pass
    return 128 * 1024 * 1024


def _choose_blocks(B, N, itemsize, target_tile_bytes):
    """Pick (rows_per_block, cols_per_block) for the (B, N) corr tile."""
    sub = max(8, 32 // itemsize)                 # sublane multiple: 8 f32 / 16 bf16 / 32 i8
    b_round = _round_up(B, sub)
    # Aim for >= ~4 batch blocks so the "parallel" axis shards across v7x's 2 TCs.
    par_cap = max(sub, _round_up(-(-B // 4), sub))
    tb = min(b_round, par_cap)

    if N * itemsize * sub <= target_tile_bytes:
        # Full-N blocks fit the budget even at the minimum row count.
        rows_budget = target_tile_bytes // max(1, N * itemsize)
        rows_budget = max(sub, (rows_budget // sub) * sub)
        tb = min(tb, rows_budget)
        blk_n = N
    else:
        # N-tiling needed: keep tb small enough that blk_n >= 128 fits the budget.
        while tb > sub and tb * 128 * itemsize > target_tile_bytes:
            tb = max(sub, (tb // 2 // sub) * sub)
        cols_budget = target_tile_bytes // max(1, tb * itemsize)
        blk_n = min(N, max(128, (cols_budget // 128) * 128))
    return tb, blk_n


def _make_kernel(N, blk_n, nk):
    need_mask = (N % blk_n) != 0

    def kernel(corr_ref, tgt_ref, out_ref, m_sc, l_sc, p_sc):
        # corr_ref: (TB, BLK_N) tile of the flattened correlation volume (VMEM)
        # tgt_ref : (TB, 1) int32 flat target index (gt_x*W + gt_y) per row (VMEM)
        # out_ref : (TB, 1) per-row loss (written on the last N block only)
        # m_sc/l_sc/p_sc: (TB, 1) f32 running max / sum-exp / picked value
        k = pl.program_id(1)

        @pl.when(k == 0)
        def _():
            m_sc[...] = jnp.full_like(m_sc, -jnp.inf)
            l_sc[...] = jnp.zeros_like(l_sc)
            p_sc[...] = jnp.zeros_like(p_sc)

        c = corr_ref[...]                                        # native dtype
        lanes = k * blk_n + jax.lax.broadcasted_iota(jnp.int32, c.shape, 1)
        if need_mask:
            # Partial trailing N block: kill out-of-range columns.
            c = jnp.where(lanes < N, c, jnp.array(-jnp.inf, dtype=c.dtype))

        # Running (online) logsumexp: row max on the native dtype, f32 accumulate.
        m_blk = jnp.max(c, axis=-1, keepdims=True).astype(jnp.float32)   # (TB, 1)
        m_new = jnp.maximum(m_sc[...], m_blk)
        alpha = jnp.exp(m_sc[...] - m_new)
        e = jnp.exp(c.astype(jnp.float32) - m_new)                        # (TB, BLK_N)
        l_sc[...] = l_sc[...] * alpha + jnp.sum(e, axis=-1, keepdims=True)
        m_sc[...] = m_new

        # Gather c[r, tgt[r]] with a lane compare (exact: single nonzero term).
        hit = lanes == tgt_ref[...]
        p_sc[...] = p_sc[...] + jnp.sum(
            jnp.where(hit, c, jnp.zeros_like(c)), axis=-1, keepdims=True
        ).astype(jnp.float32)

        @pl.when(k == nk - 1)
        def _():
            # loss = logsumexp(c) - c[tgt]
            loss = m_sc[...] + jnp.log(l_sc[...]) - p_sc[...]
            out_ref[...] = loss.astype(out_ref.dtype)

    return kernel


def max_p_2d_loss(corr, gt_x, gt_y, block_b=None, block_n=None):
    B, H, W = corr.shape
    N = H * W
    itemsize = jnp.dtype(corr.dtype).itemsize

    # mirrors .long() (truncation toward zero) for non-negative coordinates
    gx = gt_x.astype(jnp.int32)
    gy = gt_y.astype(jnp.int32)
    tgt = (gx * W + gy).reshape(B, 1)                 # flat target index

    corr_flat = corr.reshape(B, N)                    # free (contiguous) reshape

    # Generation-aware tile budget: ~12 MiB on v7x (64 MiB VMEM), ~24 MiB on v5e/v6e.
    vmem_cap = _vmem_capacity_bytes()
    target_tile = min(24 * 1024 * 1024, vmem_cap // 5)

    tb, blk_n = _choose_blocks(B, N, itemsize, target_tile)
    if block_b is not None:
        tb = block_b
    if block_n is not None:
        blk_n = block_n

    nb = pl.cdiv(B, tb)
    nk = pl.cdiv(N, blk_n)

    # torch: value = zeros_like(gt_x) -> loss carries gt_x's floating dtype
    out_dtype = gt_x.dtype if jnp.issubdtype(gt_x.dtype, jnp.floating) else jnp.float32
    out_itemsize = jnp.dtype(out_dtype).itemsize

    tile_bytes = tb * blk_n * itemsize
    vmem_limit = int(
        min(vmem_cap * 3 // 4,
            max(16 * 1024 * 1024, 2 * tile_bytes + 4 * 1024 * 1024))
    )

    cost = pl.CostEstimate(
        flops=6 * B * N,
        transcendentals=B * N,
        bytes_accessed=B * N * itemsize + B * 4 + B * out_itemsize,
    )

    kernel = _make_kernel(N, blk_n, nk)

    out = pl.pallas_call(
        kernel,
        out_shape=jax.ShapeDtypeStruct((B, 1), out_dtype),
        grid=(nb, nk),
        in_specs=[
            pl.BlockSpec((tb, blk_n), lambda i, k: (i, k)),   # corr tile (lane-dense)
            pl.BlockSpec((tb, 1), lambda i, k: (i, 0)),       # flat target index
        ],
        out_specs=pl.BlockSpec((tb, 1), lambda i, k: (i, 0)),
        scratch_shapes=[
            pltpu.VMEM((tb, 1), jnp.float32),   # running max
            pltpu.VMEM((tb, 1), jnp.float32),   # running sum-exp
            pltpu.VMEM((tb, 1), jnp.float32),   # picked target value
        ],
        compiler_params=pltpu.CompilerParams(
            dimension_semantics=("parallel", "arbitrary"),
            vmem_limit_bytes=vmem_limit,
        ),
        cost_estimate=cost,
    )(corr_flat, tgt)

    return out.reshape(-1)


def _ref_loss(corr, gt_x, gt_y):
    Bq = corr.shape[0]
    flat = corr.reshape(Bq, -1)
    log_corr = jax.nn.log_softmax(flat, axis=-1).reshape(corr.shape)
    return -log_corr[jnp.arange(Bq), gt_x.astype(jnp.int32), gt_y.astype(jnp.int32)]


if __name__ == "__main__":
    key = jax.random.PRNGKey(0)

    # --- default path (single N block, single batch block) ---
    B, H, W = 4, 16, 16
    k1, k2, k3 = jax.random.split(key, 3)
    corr = jax.random.normal(k1, (B, H, W), dtype=jnp.float32)
    gt_x = jax.random.randint(k2, (B,), 0, H).astype(jnp.float32)
    gt_y = jax.random.randint(k3, (B,), 0, W).astype(jnp.float32)

    loss = max_p_2d_loss(corr, gt_x, gt_y)
    jax.block_until_ready(loss)
    ref = _ref_loss(corr, gt_x, gt_y)
    assert loss.shape == (B,)
    assert jnp.allclose(loss, ref, atol=1e-5, rtol=1e-5), (loss, ref)

    # --- N-tiled online-logsumexp path with partial blocks on both axes ---
    B2, H2, W2 = 20, 12, 30            # N = 360; block_n = 128 -> 3 N blocks (last partial)
    k4, k5, k6 = jax.random.split(jax.random.PRNGKey(1), 3)
    corr2 = jax.random.normal(k4, (B2, H2, W2), dtype=jnp.float32)
    gt_x2 = jax.random.randint(k5, (B2,), 0, H2).astype(jnp.float32)
    gt_y2 = jax.random.randint(k6, (B2,), 0, W2).astype(jnp.float32)

    loss2 = max_p_2d_loss(corr2, gt_x2, gt_y2, block_b=8, block_n=128)
    jax.block_until_ready(loss2)
    ref2 = _ref_loss(corr2, gt_x2, gt_y2)
    assert loss2.shape == (B2,)
    assert jnp.allclose(loss2, ref2, atol=1e-5, rtol=1e-5), (loss2, ref2)

    # --- bf16 input path (16-row sublane rounding, native-dtype row max) ---
    corr3 = corr.astype(jnp.bfloat16)
    loss3 = max_p_2d_loss(corr3, gt_x, gt_y)
    jax.block_until_ready(loss3)
    ref3 = _ref_loss(corr3.astype(jnp.float32), gt_x, gt_y)
    assert jnp.allclose(loss3, ref3, atol=1e-3, rtol=1e-3), (loss3, ref3)

    print("KERNEL_OK")
</pallas_src>

<mosaic_0001>
module attributes {stable_mosaic.version = 11 : i64} {
  func.func @kernel(%arg0: i32, %arg1: i32, %arg2: memref<8x256xf32, #tpu.memory_space<vmem>>, %arg3: memref<8x1xi32, #tpu.memory_space<vmem>>, %arg4: memref<8x1xf32, #tpu.memory_space<vmem>>, %arg5: memref<8x1xf32, #tpu.memory_space<vmem>>, %arg6: memref<8x1xf32, #tpu.memory_space<vmem>>, %arg7: memref<8x1xf32, #tpu.memory_space<vmem>>) attributes {dimension_semantics = [#tpu.dimension_semantics<parallel>, #tpu.dimension_semantics<arbitrary>], iteration_bounds = array<i64: 1, 1>, scalar_prefetch = 0 : i64, scratch_operands = 3 : i64, tpu.core_type = #tpu.core_type<tc>, window_params = [{transform_indices = @transform_0, window_bounds = array<i64: 8, 256>}, {transform_indices = @transform_1, window_bounds = array<i64: 8, 1>}, {transform_indices = @transform_2, window_bounds = array<i64: 8, 1>}]} {
    %c0_i32 = arith.constant 0 : i32
    %0 = arith.cmpi eq, %arg1, %c0_i32 : i32
    %1 = arith.extui %0 : i1 to i32
    %c0_i32_0 = arith.constant 0 : i32
    %2 = arith.cmpi ne, %1, %c0_i32_0 : i32
    scf.if %2 {
      %cst_23 = arith.constant 0xFF800000 : f32
      %38 = vector.broadcast %cst_23 : f32 to vector<8x1xf32>
      %c0_24 = arith.constant 0 : index
      %c0_25 = arith.constant 0 : index
      %39 = vector.load %arg5[%c0_24, %c0_25] : memref<8x1xf32, #tpu.memory_space<vmem>>, vector<8x1xf32>
      tpu.vector_store %arg5[%c0_24, %c0_25], %38 {strides = array<i32>} : memref<8x1xf32, #tpu.memory_space<vmem>>, vector<8x1xf32>,
      %cst_26 = arith.constant 0.000000e+00 : f32
      %40 = vector.broadcast %cst_26 : f32 to vector<8x1xf32>
      %c0_27 = arith.constant 0 : index
      %c0_28 = arith.constant 0 : index
      %41 = vector.load %arg6[%c0_27, %c0_28] : memref<8x1xf32, #tpu.memory_space<vmem>>, vector<8x1xf32>
      tpu.vector_store %arg6[%c0_27, %c0_28], %40 {strides = array<i32>} : memref<8x1xf32, #tpu.memory_space<vmem>>, vector<8x1xf32>,
      %cst_29 = arith.constant 0.000000e+00 : f32
      %42 = vector.broadcast %cst_29 : f32 to vector<8x1xf32>
      %c0_30 = arith.constant 0 : index
      %c0_31 = arith.constant 0 : index
      %43 = vector.load %arg7[%c0_30, %c0_31] : memref<8x1xf32, #tpu.memory_space<vmem>>, vector<8x1xf32>
      tpu.vector_store %arg7[%c0_30, %c0_31], %42 {strides = array<i32>} : memref<8x1xf32, #tpu.memory_space<vmem>>, vector<8x1xf32>,
    } else {
    }
    %c0 = arith.constant 0 : index
    %c0_1 = arith.constant 0 : index
    %3 = vector.load %arg2[%c0, %c0_1] : memref<8x256xf32, #tpu.memory_space<vmem>>, vector<8x256xf32>
    %c256_i32 = arith.constant 256 : i32
    %4 = arith.muli %arg1, %c256_i32 : i32
    %5 = tpu.iota {dimensions = array<i32: 1>} : vector<8x256xi32>
    %6 = vector.broadcast %4 : i32 to vector<8x256xi32>
    %7 = arith.addi %6, %5 : vector<8x256xi32>
    %cst = arith.constant dense<0xFF800000> : vector<8xf32>
    %8 = vector.multi_reduction <maximumf>, %3, %cst [1] : vector<8x256xf32> to vector<8xf32>
    %9 = vector.shape_cast %8 : vector<8xf32> to vector<8x1xf32>
    %c0_2 = arith.constant 0 : index
    %c0_3 = arith.constant 0 : index
    %10 = vector.load %arg5[%c0_2, %c0_3] : memref<8x1xf32, #tpu.memory_space<vmem>>, vector<8x1xf32>
    %11 = arith.maximumf %10, %9 : vector<8x1xf32>
    %c0_4 = arith.constant 0 : index
    %c0_5 = arith.constant 0 : index
    %12 = vector.load %arg5[%c0_4, %c0_5] : memref<8x1xf32, #tpu.memory_space<vmem>>, vector<8x1xf32>
    %13 = arith.subf %12, %11 : vector<8x1xf32>
    %14 = math.exp %13 : vector<8x1xf32>
    %15 = vector.broadcast %11 : vector<8x1xf32> to vector<8x256xf32>
    %16 = arith.subf %3, %15 : vector<8x256xf32>
    %17 = math.exp %16 : vector<8x256xf32>
    %c0_6 = arith.constant 0 : index
    %c0_7 = arith.constant 0 : index
    %18 = vector.load %arg6[%c0_6, %c0_7] : memref<8x1xf32, #tpu.memory_space<vmem>>, vector<8x1xf32>
    %19 = arith.mulf %18, %14 : vector<8x1xf32>
    %cst_8 = arith.constant dense<0.000000e+00> : vector<8xf32>
    %20 = vector.multi_reduction <add>, %17, %cst_8 [1] : vector<8x256xf32> to vector<8xf32>
    %21 = vector.shape_cast %20 : vector<8xf32> to vector<8x1xf32>
    %22 = arith.addf %19, %21 : vector<8x1xf32>
    %c0_9 = arith.constant 0 : index
    %c0_10 = arith.constant 0 : index
    %23 = vector.load %arg6[%c0_9, %c0_10] : memref<8x1xf32, #tpu.memory_space<vmem>>, vector<8x1xf32>
    tpu.vector_store %arg6[%c0_9, %c0_10], %22 {strides = array<i32>} : memref<8x1xf32, #tpu.memory_space<vmem>>, vector<8x1xf32>,
    %c0_11 = arith.constant 0 : index
    %c0_12 = arith.constant 0 : index
    %24 = vector.load %arg5[%c0_11, %c0_12] : memref<8x1xf32, #tpu.memory_space<vmem>>, vector<8x1xf32>
    tpu.vector_store %arg5[%c0_11, %c0_12], %11 {strides = array<i32>} : memref<8x1xf32, #tpu.memory_space<vmem>>, vector<8x1xf32>,
    %c0_13 = arith.constant 0 : index
    %c0_14 = arith.constant 0 : index
    %25 = vector.load %arg3[%c0_13, %c0_14] : memref<8x1xi32, #tpu.memory_space<vmem>>, vector<8x1xi32>
    %26 = vector.broadcast %25 : vector<8x1xi32> to vector<8x256xi32>
    %27 = arith.cmpi eq, %7, %26 : vector<8x256xi32>
    %c0_15 = arith.constant 0 : index
    %c0_16 = arith.constant 0 : index
    %28 = vector.load %arg7[%c0_15, %c0_16] : memref<8x1xf32, #tpu.memory_space<vmem>>, vector<8x1xf32>
    %cst_17 = arith.constant 0.000000e+00 : f32
    %29 = vector.broadcast %cst_17 : f32 to vector<8x256xf32>
    %30 = arith.select %27, %3, %29 : vector<8x256xi1>, vector<8x256xf32>
    %cst_18 = arith.constant dense<0.000000e+00> : vector<8xf32>
    %31 = vector.multi_reduction <add>, %30, %cst_18 [1] : vector<8x256xf32> to vector<8xf32>
    %32 = vector.shape_cast %31 : vector<8xf32> to vector<8x1xf32>
    %33 = arith.addf %28, %32 : vector<8x1xf32>
    %c0_19 = arith.constant 0 : index
    %c0_20 = arith.constant 0 : index
    %34 = vector.load %arg7[%c0_19, %c0_20] : memref<8x1xf32, #tpu.memory_space<vmem>>, vector<8x1xf32>
    tpu.vector_store %arg7[%c0_19, %c0_20], %33 {strides = array<i32>} : memref<8x1xf32, #tpu.memory_space<vmem>>, vector<8x1xf32>,
    %c0_i32_21 = arith.constant 0 : i32
    %35 = arith.cmpi eq, %arg1, %c0_i32_21 : i32
    %36 = arith.extui %35 : i1 to i32
    %c0_i32_22 = arith.constant 0 : i32
    %37 = arith.cmpi ne, %36, %c0_i32_22 : i32
    scf.if %37 {
      %c0_23 = arith.constant 0 : index
      %c0_24 = arith.constant 0 : index
      %38 = vector.load %arg5[%c0_23, %c0_24] : memref<8x1xf32, #tpu.memory_space<vmem>>, vector<8x1xf32>
      %c0_25 = arith.constant 0 : index
      %c0_26 = arith.constant 0 : index
      %39 = vector.load %arg6[%c0_25, %c0_26] : memref<8x1xf32, #tpu.memory_space<vmem>>, vector<8x1xf32>
      %40 = math.log %39 : vector<8x1xf32>
      %41 = arith.addf %38, %40 : vector<8x1xf32>
      %c0_27 = arith.constant 0 : index
      %c0_28 = arith.constant 0 : index
      %42 = vector.load %arg7[%c0_27, %c0_28] : memref<8x1xf32, #tpu.memory_space<vmem>>, vector<8x1xf32>
      %43 = arith.subf %41, %42 : vector<8x1xf32>
      %c0_29 = arith.constant 0 : index
      %c0_30 = arith.constant 0 : index
      %44 = vector.load %arg4[%c0_29, %c0_30] : memref<8x1xf32, #tpu.memory_space<vmem>>, vector<8x1xf32>
      tpu.vector_store %arg4[%c0_29, %c0_30], %43 {strides = array<i32>} : memref<8x1xf32, #tpu.memory_space<vmem>>, vector<8x1xf32>,
    } else {
    }
    return
  }
  func.func @transform_0(%arg0: i32, %arg1: i32) -> (i32, i32) {
    %c0_i32 = arith.constant 0 : i32
    return %arg0, %arg1 : i32, i32
  }
  func.func @transform_1(%arg0: i32, %arg1: i32) -> (i32, i32) {
    %c0_i32 = arith.constant 0 : i32
    %c0_i32_0 = arith.constant 0 : i32
    return %arg0, %c0_i32 : i32, i32
  }
  func.func @transform_2(%arg0: i32, %arg1: i32) -> (i32, i32) {
    %c0_i32 = arith.constant 0 : i32
    %c0_i32_0 = arith.constant 0 : i32
    return %arg0, %c0_i32 : i32, i32
  }
}

</mosaic_0001>

<llo_original>
// kernel: tpu_custom_call.1
$region0: #{tpu_custom_call.1}
  #allocation0 [shape = 'u32[]', space=smem, size = 0x4, offset = 0x4, fixed_abs, tag = 'smem constant byte address 0x4 - core index']
  #allocation1 [shape = 'u32[144,128]{1,0:T(1,128)}', space=vmem, size = 0x12000, scoped, tag = 'internal scratch']
  #allocation2 [shape = 'f32[8,1]{1,0:T(8,128)}', space=vmem, size = 0x1000, scoped, tag = 'scratch operand']
  #allocation3 [shape = 'f32[8,1]{1,0:T(8,128)}', space=vmem, size = 0x1000, scoped, tag = 'scratch operand']
  #allocation4 [shape = 'f32[8,1]{1,0:T(8,128)}', space=vmem, size = 0x1000, scoped, tag = 'scratch operand']
  %s0 = inlined_call_operand.hbm [shape: f32[4,256], index: 0, kind: input, shape index: {}]
  %s1 = inlined_call_operand.vmem [shape: s32[4,1], index: 1, kind: input, shape index: {}]
  %s2 = inlined_call_operand.vmem [shape: f32[4,1], index: 2, kind: output, shape index: {}]
  %s3 = sld [smem:[#allocation0]]
  $region60: #{tpu_custom_call.1} parent=0
    _
  %s5 = ssub.s32 1, %s3
  %s6 = scalar_select 0, %s5, %s3
  $region1: #{tpu_custom_call.1} parent=0
    #allocation5 [shape = 'u8[8192]{0}', space=vmem, size = 0x2000, scoped, tag = 'input window, operand 0, single buffered']
    #allocation6 [shape = 's32[1]{0}', space=sflag, size = 0x4, scoped, tag = 'scoped memory for tpu_custom_call.1']
    #allocation7 [shape = 'u8[4096]{0}', space=vmem, size = 0x1000, scoped, tag = 'output window, operand 0, single buffered']
    %7 = vsyncpa [#allocation6], 0
    // Predicated region
    $region2: #{tpu_custom_call.1} parent=1 // pred_check
      _
    $region3: #{tpu_custom_call.1} parent=1 // pred_check_branch
      %9 = sbr.rel (0) target = $region5
    $region4: #{tpu_custom_call.1} parent=1 // pred_region
      %s11 = ssub.s32 256, 128
      %12 = vsyncadd [#allocation6], %s11
      %s13 = sshll.u32 [#allocation5], 4
      %s14 = int_to_ptr.vmem [resolvable:$true] %s13
      %19 = dma.hbm_to_vmem [thread:$0]  %s0, 128, %s14, [#allocation6], 128, 128, 8
    $region5: #{tpu_custom_call.1} parent=1 // pred_fallthru
      _
    // Predicated region
    $region6: #{tpu_custom_call.1} parent=1 // pred_check
      _
    $region7: #{tpu_custom_call.1} parent=1 // pred_check_branch
      %21 = sbr.rel (0) target = $region9
    $region8: #{tpu_custom_call.1} parent=1 // pred_region
      _
    $region9: #{tpu_custom_call.1} parent=1 // pred_fallthru
      _
    // Predicated region
    $region10: #{tpu_custom_call.1} parent=1 // pred_check
      _
    $region11: #{tpu_custom_call.1} parent=1 // pred_check_branch
      %23 = sbr.rel (0) target = $region13
    $region12: #{tpu_custom_call.1} parent=1 // pred_region
      %24 = dma.done [#allocation6], 256
    $region13: #{tpu_custom_call.1} parent=1 // pred_fallthru
      _
    %p25 = scmp.eq.s32.totalorder 0, 0
    // Predicated region
    $region14: #{tpu_custom_call.1} parent=1 // pred_check
      %p26 = pneg %p25
    $region15: #{tpu_custom_call.1} parent=1 // pred_check_branch
      %28 = sbr.rel (%p26) target = $region17
    $region16: #{tpu_custom_call.1} parent=1 // pred_region
      %vm29 = vcmask 7168
      %30 = vst.msk [vmem:[#allocation2] sm:$0xff] %vm29, -inf
      %31 = vst.msk [vmem:[#allocation3] sm:$0xff] %vm29, 0.0
      %32 = vst.msk [vmem:[#allocation4] sm:$0xff] %vm29, 0.0
    $region17: #{tpu_custom_call.1} parent=1 // pred_fallthru
      _
    %v33 = vld [vmem:[#allocation5] sm:$0xff]
    %v34 = vld [vmem:[#allocation5 + $0x8] sm:$0xff]
    %s35 = smul.u32 0, 256
    %v36 = vlaneseq
    %v37 = vand.u32 %v36, 127
    %v38 = vadd.s32 %v37, 128
    %v39 = vstv %s35
    %v40 = vadd.s32 %v39, %v37
    %v41 = vadd.s32 %v39, %v38
    %v44 = vcombine.low %v33, %v34
    %v45 = vcombine.high %v33, %v34
    %v48 = vmax.f32 %v44, %v45
    %49 = vmax.xlane.f32.xlu0 %v48
    %v50 = vpop.xlane.xlu0 %49
    %v51 = vld [vmem:[#allocation2] sm:$0xff]
    %v52 = vmax.f32 %v51, %v50
    %v53 = vsub.f32 %v51, %v52
    %v54 = vmul.f32 %v53, 1.442695
    %v55 = vpow.pop %v54
    %57 = vset.pattern.permute.xlu0 0
    %58 = vperm.xlu0 %57, %v52
    %v59 = vpop.permute.xlu0 %58
    %v61 = vunpack.c.l.s4 839922192
    %v62 = vunpack.c.0.s8 %v61
    %v63 = vlaneseq
    %v64 = vshrl.u32 %v63, 7
    %v65 = vsub.s32 %v62, %v64
    %v66 = vrot.slane %v59, %v65
    %v68 = vunpack.c.l.s4 1985246804
    %v69 = vunpack.c.0.s8 %v68
    %v70 = vlaneseq
    %v71 = vshrl.u32 %v70, 7
    %v72 = vsub.s32 %v69, %v71
    %v73 = vrot.slane %v59, %v72
    %v76 = vsub.f32 %v33, %v66
    %v77 = vsub.f32 %v34, %v73
    %v78 = vmul.f32 %v76, 1.442695
    %v79 = vpow.pop %v78
    %v80 = vmul.f32 %v77, 1.442695
    %v81 = vpow.pop %v80
    %v82 = vld [vmem:[#allocation3] sm:$0xff]
    %v83 = vmul.f32 %v82, %v55
    %v86 = vcombine.low %v79, %v81
    %v87 = vcombine.high %v79, %v81
    %v90 = vadd.f32 %v86, %v87
    %91 = vadd.xlane.f32.xlu0 %v90
    %v92 = vpop.xlane.xlu0 %91
    %v93 = vadd.f32 %v83, %v92
    %vm94 = vcmask 7168
    %95 = vst.msk [vmem:[#allocation3] sm:$0xff] %vm94, %v93
    %96 = vst.msk [vmem:[#allocation2] sm:$0xff] %vm94, %v52
    %v97 = vld [vmem:[%s1] sm:$0xff]
    %98 = vset.pattern.permute.xlu0 0
    %99 = vperm.xlu0 %98, %v97
    %v100 = vpop.permute.xlu0 %99
    %vm101 = vcmp.eq.s32.totalorder %v40, %v100
    %vm102 = vcmp.eq.s32.totalorder %v41, %v100
    %v103 = vld [vmem:[#allocation4] sm:$0xff]
    %v104 = vsel %vm101, %v44, 0.0
    %v105 = vsel %vm102, %v45, 0.0
    %v106 = vadd.f32 %v104, %v105
    %107 = vadd.xlane.f32.xlu0 %v106
    %v108 = vpop.xlane.xlu0 %107
    %v109 = vadd.f32 %v103, %v108
    %110 = vst.msk [vmem:[#allocation4] sm:$0xff] %vm94, %v109
    // Predicated region
    $region18: #{tpu_custom_call.1} parent=1 // pred_check
      %p111 = pneg %p25
    $region19: #{tpu_custom_call.1} parent=1 // pred_check_branch
      %113 = sbr.rel (%p111) target = $region21
    $region20: #{tpu_custom_call.1} parent=1 // pred_region
      %v114 = vld [vmem:[#allocation2] sm:$0xff]
      %v115 = vld [vmem:[#allocation3] sm:$0xff]
      %v116 = vlog2.pop %v115
      %v117 = vmul.f32 %v116, 0.6931472
      %v118 = vadd.f32 %v114, %v117
      %v119 = vld [vmem:[#allocation4] sm:$0xff]
      %v120 = vsub.f32 %v118, %v119
      %121 = vst.msk [vmem:[#allocation7] sm:$0xff] %vm94, %v120
    $region21: #{tpu_custom_call.1} parent=1 // pred_fallthru
      _
    // Predicated region
    $region22: #{tpu_custom_call.1} parent=1 // pred_check
      _
    $region23: #{tpu_custom_call.1} parent=1 // pred_check_branch
      %123 = sbr.rel (0) target = $region25
    $region24: #{tpu_custom_call.1} parent=1 // pred_region
      // Predicated region
      $region26: #{tpu_custom_call.1} parent=24 // pred_check
        _
      $region27: #{tpu_custom_call.1} parent=24 // pred_check_branch
        %125 = sbr.rel (0) target = $region29
      $region28: #{tpu_custom_call.1} parent=24 // pred_region
        // Predicated region
        $region30: #{tpu_custom_call.1} parent=28 // pred_check
          _
        $region31: #{tpu_custom_call.1} parent=28 // pred_check_branch
          %127 = sbr.rel target = $region33
        $region32: #{tpu_custom_call.1} parent=28 // pred_region
          // Predicated region
          $region45: #{tpu_custom_call.1} parent=32 // pred_check
            _
          $region46: #{tpu_custom_call.1} parent=32 // pred_check_branch
            %142 = sbr.rel (0) target = $region48
          $region47: #{tpu_custom_call.1} parent=32 // pred_region
            loop: start=0, step=1, limit=1
            $region49: #{tpu_custom_call.1} parent=47 // loop_pre_header
              _
            $region50: #{tpu_custom_call.1} parent=47 // loop_header
              %s145 = sphi 0, %s149
              %p146 = scmp.ge.s32.totalorder %s145, 1
              %s150 = sphi [#allocation7], [#allocation7]
              %s151 = sphi %s2, %s2
            $region51: #{tpu_custom_call.1} parent=47 // loop_header_branch
              %148 = sbr.rel (%p146) target = $region55
            $region52: #{tpu_custom_call.1} parent=47 // loop_body
              %v152 = vld [vmem:[%s150] sm:$0xf]
              %153 = vst [vmem:[%s151] sm:$0xf] %v152
            $region53: #{tpu_custom_call.1} parent=47 // loop_footer
              %s149 = sadd.s32 1, %s145
            $region54: #{tpu_custom_call.1} parent=47 // loop_footer_branch
              %144 = sbr.rel target = $region50
            $region55: #{tpu_custom_call.1} parent=47 // loop_exit
              _
          $region48: #{tpu_custom_call.1} parent=32 // pred_fallthru
            _
        $region33: #{tpu_custom_call.1} parent=28 // pred_fallthru
          _
        // Predicated region
        $region34: #{tpu_custom_call.1} parent=28 // pred_check
          _
        $region35: #{tpu_custom_call.1} parent=28 // pred_check_branch
          %129 = sbr.rel (0) target = $region37
        $region36: #{tpu_custom_call.1} parent=28 // pred_region
          loop: start=0, step=1, limit=1
          $region38: #{tpu_custom_call.1} parent=36 // loop_pre_header
            _
          $region39: #{tpu_custom_call.1} parent=36 // loop_header
            %s132 = sphi 0, %s136
            %p133 = scmp.ge.s32.totalorder %s132, 1
            %s137 = sphi [#allocation7], [#allocation7]
            %s138 = sphi %s2, %s2
          $region40: #{tpu_custom_call.1} parent=36 // loop_header_branch
            %135 = sbr.rel (%p133) target = $region44
          $region41: #{tpu_custom_call.1} parent=36 // loop_body
            %v139 = vld [vmem:[%s137] sm:$0xf]
            %140 = vst [vmem:[%s138] sm:$0xf] %v139
          $region42: #{tpu_custom_call.1} parent=36 // loop_footer
            %s136 = sadd.s32 1, %s132
          $region43: #{tpu_custom_call.1} parent=36 // loop_footer_branch
            %131 = sbr.rel target = $region39
          $region44: #{tpu_custom_call.1} parent=36 // loop_exit
            _
        $region37: #{tpu_custom_call.1} parent=28 // pred_fallthru
          _
      $region29: #{tpu_custom_call.1} parent=24 // pred_fallthru
        _
      %154 = vnop
    $region25: #{tpu_custom_call.1} parent=1 // pred_fallthru
      _
    // Predicated region
    $region56: #{tpu_custom_call.1} parent=1 // pred_check
      _
    $region57: #{tpu_custom_call.1} parent=1 // pred_check_branch
      %156 = sbr.rel (0) target = $region59
    $region58: #{tpu_custom_call.1} parent=1 // pred_region
      _
    $region59: #{tpu_custom_call.1} parent=1 // pred_fallthru
      _
    %157 = vsyncpa [#allocation6], 1

</llo_original>
